<compile_context>
chip_gen: v7x
topology: tpu7x:2x2x1
jax: 0.10.0
libtpu: 0.0.40
codegen_flags: <defaults>
</compile_context>

<pallas_src>
import jax
import jax.numpy as jnp
import numpy as np
from jax.experimental import pallas as pl
from jax.experimental.pallas import tpu as pltpu


def _round_up(x, m):
    return ((x + m - 1) // m) * m


def _vmem_capacity_bytes():
    """Per-core physical VMEM; conservative 64 MiB (v7x) fallback."""
    try:
        return int(getattr(pltpu.get_tpu_info(), "vmem_capacity_bytes", 64 * 2**20))
    except Exception:
        return 64 * 2**20


# ----------------------------- Pallas kernel ------------------------------ #

def _linear_kernel(x_ref, w_ref, b_ref, o_ref):
    """o = x @ Wt + b on a (tm, K) row tile x (K, tn) weight panel.

    MXU matmul with f32 accumulation; bias is f32; single cast on store.
    """
    acc = jnp.dot(x_ref[...], w_ref[...], preferred_element_type=jnp.float32)
    o_ref[...] = (acc + b_ref[...]).astype(o_ref.dtype)


# --------------------------- parameter prep -------------------------------- #

def prepare_stitching_params(weight, bias, compute_dtype=None):
    """One-time layout plumbing (hoist out of the hot path, call once):

      * W -> W.T  (in_dim, out_dim) so the kernel is a plain x @ Wt,
      * bias kept in f32 (in-kernel add is f32, matches PyTorch's f32 bias),
      * out_dim padded up to a multiple of 128 so output stores stay
        lane-dense / unmasked on every TPU generation.
    """
    out_dim, in_dim = weight.shape
    assert bias.shape == (out_dim,)
    if compute_dtype is None:
        compute_dtype = weight.dtype
    n_pad = _round_up(out_dim, 128)
    wt = jnp.transpose(weight).astype(compute_dtype)          # (K, N)
    b2d = bias.astype(jnp.float32).reshape(1, out_dim)        # (1, N) f32
    if n_pad != out_dim:
        wt = jnp.pad(wt, ((0, 0), (0, n_pad - out_dim)))
        b2d = jnp.pad(b2d, ((0, 0), (0, n_pad - out_dim)))
    return {"wt": wt, "b2d": b2d, "out_dim": out_dim}


# ------------------------- StitchingLayer forward -------------------------- #

def stitching_layer_apply(x, params, *, tm=1024):
    """forward(x) = Linear(in_dim, out_dim)(x) with pre-prepared params."""
    wt, b2d, out_dim = params["wt"], params["b2d"], params["out_dim"]
    in_dim, n_pad = wt.shape
    orig_shape = x.shape
    assert orig_shape[-1] == in_dim

    # Flatten tokens into a row matrix; features stay on the lane dim.
    M = int(np.prod(orig_shape[:-1])) if len(orig_shape) > 1 else 1
    x2d = x.reshape(M, in_dim)

    itm = jnp.dtype(x2d.dtype).itemsize
    witm = jnp.dtype(wt.dtype).itemsize
    sub = max(8, 32 // itm)                   # sublane packing: 8 f32, 16 bf16

    cap = _vmem_capacity_bytes()
    budget = cap - 8 * 2**20                  # headroom for Mosaic scratch/sems

    # Weight panel width: keep the whole (K, N) weight resident with a single
    # buffer when it fits comfortably; otherwise stream (K, tn) column panels
    # (needed e.g. on v7x for very large stitches).
    w_bytes = in_dim * n_pad * witm
    if w_bytes <= budget // 2:
        tn = n_pad
        w_buffers = 1                          # constant index_map -> 1 buffer
    else:
        tn = ((budget // 2) // (2 * in_dim * witm)) // 256 * 256
        tn = int(min(max(tn, 256), n_pad))
        w_buffers = 2                          # panels stream -> double buffer

    # Row tile: big (hit HBM roofline, amortize per-grid-step overhead),
    # multiple of the sublane packing, shrunk only if VMEM requires it.
    tm_eff = _round_up(min(tm, _round_up(M, sub)), sub)

    def _est(tm_):
        return (w_buffers * in_dim * tn * witm          # weight panel(s)
                + w_buffers * 8 * tn * 4                # bias (sublane-padded)
                + 2 * tm_ * in_dim * itm                # x tiles (double buf)
                + 2 * tm_ * tn * itm                    # out tiles (double buf)
                + tm_ * tn * 4)                         # f32 matmul staging

    while _est(tm_eff) > budget and tm_eff > sub:
        tm_eff = max(sub, _round_up(tm_eff // 2, sub))

    # Weight-panel axis outer (panel resident across inner row loop), rows
    # inner. Partial trailing row block handled by Pallas (no pad/slice).
    grid = (pl.cdiv(n_pad, tn), pl.cdiv(M, tm_eff))

    vmem_limit = int(min(budget, max(2 * _est(tm_eff), 32 * 2**20)))

    cost = pl.CostEstimate(
        flops=2 * M * in_dim * out_dim,
        bytes_accessed=(M * in_dim * itm + in_dim * n_pad * witm
                        + M * n_pad * itm + n_pad * 4),
        transcendentals=0,
    )

    def _call(with_pipeline_mode):
        x_spec = pl.BlockSpec((tm_eff, in_dim), lambda j, i: (i, 0))
        if with_pipeline_mode:
            w_spec = pl.BlockSpec((in_dim, tn), lambda j, i: (0, j),
                                  pipeline_mode=pl.Buffered(w_buffers))
            b_spec = pl.BlockSpec((1, tn), lambda j, i: (0, j),
                                  pipeline_mode=pl.Buffered(w_buffers))
        else:
            w_spec = pl.BlockSpec((in_dim, tn), lambda j, i: (0, j))
            b_spec = pl.BlockSpec((1, tn), lambda j, i: (0, j))
        return pl.pallas_call(
            _linear_kernel,
            out_shape=jax.ShapeDtypeStruct((M, n_pad), x2d.dtype),
            grid_spec=pltpu.PrefetchScalarGridSpec(
                num_scalar_prefetch=0,
                grid=grid,
                in_specs=[x_spec, w_spec, b_spec],
                out_specs=pl.BlockSpec((tm_eff, tn), lambda j, i: (i, j)),
            ),
            compiler_params=pltpu.CompilerParams(
                dimension_semantics=("parallel", "parallel"),
                vmem_limit_bytes=vmem_limit,
            ),
            cost_estimate=cost,
        )(x2d, wt, b2d)

    try:
        out2d = _call(True)
    except Exception:
        # Fallback for jax versions without BlockSpec pipeline_mode support.
        out2d = _call(False)

    if n_pad != out_dim:
        out2d = out2d[:, :out_dim]
    return out2d.reshape(*orig_shape[:-1], out_dim)


def stitching_layer_forward(x, weight, bias, *, tm=1024):
    """Convenience one-shot wrapper taking PyTorch nn.Linear layout
    (weight: (out_dim, in_dim), bias: (out_dim,)). For hot paths, call
    prepare_stitching_params() once and stitching_layer_apply() per step."""
    params = prepare_stitching_params(weight, bias, compute_dtype=x.dtype)
    return stitching_layer_apply(x, params, tm=tm)


# --------------------------------- Main ------------------------------------ #

if __name__ == "__main__":
    key = jax.random.PRNGKey(0)
    kx, kw, kb, kxr, kx2, kw2, kb2 = jax.random.split(key, 7)

    # Case 1: lane-aligned dims, f32 (matches PyTorch nn.Linear numerics).
    B, N, IN_DIM, OUT_DIM = 2, 8, 128, 256
    x = jax.random.normal(kx, (B, N, IN_DIM), jnp.float32)
    weight = (jax.random.normal(kw, (OUT_DIM, IN_DIM), jnp.float32)
              / np.sqrt(IN_DIM))
    bias = jax.random.normal(kb, (OUT_DIM,), jnp.float32) * 0.01

    params = prepare_stitching_params(weight, bias)   # one-time param prep
    out = jax.block_until_ready(stitching_layer_apply(x, params))
    ref = x @ weight.T + bias
    np.testing.assert_allclose(np.asarray(out), np.asarray(ref),
                               rtol=1e-5, atol=1e-5)
    assert out.shape == (B, N, OUT_DIM)

    # Case 2: ragged token count -> partial trailing row block, no pad/copy.
    x_r = jax.random.normal(kxr, (3, 7, IN_DIM), jnp.float32)
    out_r = jax.block_until_ready(stitching_layer_apply(x_r, params))
    ref_r = x_r @ weight.T + bias
    np.testing.assert_allclose(np.asarray(out_r), np.asarray(ref_r),
                               rtol=1e-5, atol=1e-5)

    # Case 3: non-128-multiple dims (tiny-ViT style stitch) -> lane padding
    # of Wt/bias/out in the wrapper keeps in-kernel stores unmasked.
    IN2, OUT2 = 96, 192
    x2 = jax.random.normal(kx2, (2, 5, IN2), jnp.float32)
    w2 = jax.random.normal(kw2, (OUT2, IN2), jnp.float32) / np.sqrt(IN2)
    b2 = jax.random.normal(kb2, (OUT2,), jnp.float32) * 0.01
    out2 = jax.block_until_ready(stitching_layer_forward(x2, w2, b2))
    ref2 = x2 @ w2.T + b2
    np.testing.assert_allclose(np.asarray(out2), np.asarray(ref2),
                               rtol=1e-5, atol=1e-5)

    # Case 4: bf16 activations/weights (bf16 MXU path); bias stays f32.
    params_bf = prepare_stitching_params(weight, bias,
                                         compute_dtype=jnp.bfloat16)
    out_bf = jax.block_until_ready(
        stitching_layer_apply(x.astype(jnp.bfloat16), params_bf))
    np.testing.assert_allclose(np.asarray(out_bf.astype(jnp.float32)),
                               np.asarray(ref), rtol=5e-2, atol=5e-2)

    print("KERNEL_OK")
</pallas_src>

<mosaic_0001>
module attributes {stable_mosaic.version = 11 : i64} {
  func.func @_linear_kernel(%arg0: i32, %arg1: i32, %arg2: memref<16x128xf32, #tpu.memory_space<vmem>>, %arg3: memref<128x256xf32, #tpu.memory_space<vmem>>, %arg4: memref<1x256xf32, #tpu.memory_space<vmem>>, %arg5: memref<16x256xf32, #tpu.memory_space<vmem>>) attributes {dimension_semantics = [#tpu.dimension_semantics<parallel>, #tpu.dimension_semantics<parallel>], iteration_bounds = array<i64: 1, 1>, scalar_prefetch = 0 : i64, scratch_operands = 0 : i64, tpu.core_type = #tpu.core_type<tc>, window_params = [{transform_indices = @transform_0, window_bounds = array<i64: 16, 128>}, {pipeline_mode = #tpu.pipeline_mode<synchronous>, transform_indices = @transform_1, window_bounds = array<i64: 128, 256>}, {pipeline_mode = #tpu.pipeline_mode<synchronous>, transform_indices = @transform_2, window_bounds = array<i64: 1, 256>}, {transform_indices = @transform_3, window_bounds = array<i64: 16, 256>}]} {
    %c0 = arith.constant 0 : index
    %c0_0 = arith.constant 0 : index
    %0 = vector.load %arg2[%c0, %c0_0] : memref<16x128xf32, #tpu.memory_space<vmem>>, vector<16x128xf32>
    %c0_1 = arith.constant 0 : index
    %c0_2 = arith.constant 0 : index
    %1 = vector.load %arg3[%c0_1, %c0_2] : memref<128x256xf32, #tpu.memory_space<vmem>>, vector<128x256xf32>
    %cst = arith.constant dense<0.000000e+00> : vector<16x256xf32>
    %2 = tpu.matmul %0, %1, %cst {dimension_numbers = #tpu.dot_dimension_numbers<[1], [0], [0], [1], [0, 0, 1, 1], [], []>} : vector<16x128xf32>, vector<128x256xf32>, vector<16x256xf32> -> vector<16x256xf32>
    %c0_3 = arith.constant 0 : index
    %c0_4 = arith.constant 0 : index
    %3 = vector.load %arg4[%c0_3, %c0_4] : memref<1x256xf32, #tpu.memory_space<vmem>>, vector<1x256xf32>
    %4 = vector.broadcast %3 : vector<1x256xf32> to vector<16x256xf32>
    %5 = arith.addf %2, %4 : vector<16x256xf32>
    %c0_5 = arith.constant 0 : index
    %c0_6 = arith.constant 0 : index
    %6 = vector.load %arg5[%c0_5, %c0_6] : memref<16x256xf32, #tpu.memory_space<vmem>>, vector<16x256xf32>
    tpu.vector_store %arg5[%c0_5, %c0_6], %5 {strides = array<i32>} : memref<16x256xf32, #tpu.memory_space<vmem>>, vector<16x256xf32>,
    return
  }
  func.func @transform_0(%arg0: i32, %arg1: i32) -> (i32, i32) {
    %c0_i32 = arith.constant 0 : i32
    %c0_i32_0 = arith.constant 0 : i32
    return %arg1, %c0_i32 : i32, i32
  }
  func.func @transform_1(%arg0: i32, %arg1: i32) -> (i32, i32) {
    %c0_i32 = arith.constant 0 : i32
    %c0_i32_0 = arith.constant 0 : i32
    return %c0_i32, %arg0 : i32, i32
  }
  func.func @transform_2(%arg0: i32, %arg1: i32) -> (i32, i32) {
    %c0_i32 = arith.constant 0 : i32
    %c0_i32_0 = arith.constant 0 : i32
    return %c0_i32, %arg0 : i32, i32
  }
  func.func @transform_3(%arg0: i32, %arg1: i32) -> (i32, i32) {
    %c0_i32 = arith.constant 0 : i32
    return %arg1, %arg0 : i32, i32
  }
}

module attributes {stable_mosaic.version = 11 : i64} {
  func.func @_linear_kernel(%arg0: i32, %arg1: i32, %arg2: memref<16x128xf32, #tpu.memory_space<vmem>>, %arg3: memref<128x256xf32, #tpu.memory_space<vmem>>, %arg4: memref<1x256xf32, #tpu.memory_space<vmem>>, %arg5: memref<16x256xf32, #tpu.memory_space<vmem>>) attributes {dimension_semantics = [#tpu.dimension_semantics<parallel>, #tpu.dimension_semantics<parallel>], iteration_bounds = array<i64: 1, 1>, scalar_prefetch = 0 : i64, scratch_operands = 0 : i64, tpu.core_type = #tpu.core_type<tc>, window_params = [{transform_indices = @transform_0, window_bounds = array<i64: 16, 128>}, {transform_indices = @transform_1, window_bounds = array<i64: 128, 256>}, {transform_indices = @transform_2, window_bounds = array<i64: 1, 256>}, {transform_indices = @transform_3, window_bounds = array<i64: 16, 256>}]} {
    %c0 = arith.constant 0 : index
    %c0_0 = arith.constant 0 : index
    %0 = vector.load %arg2[%c0, %c0_0] : memref<16x128xf32, #tpu.memory_space<vmem>>, vector<16x128xf32>
    %c0_1 = arith.constant 0 : index
    %c0_2 = arith.constant 0 : index
    %1 = vector.load %arg3[%c0_1, %c0_2] : memref<128x256xf32, #tpu.memory_space<vmem>>, vector<128x256xf32>
    %cst = arith.constant dense<0.000000e+00> : vector<16x256xf32>
    %2 = tpu.matmul %0, %1, %cst {dimension_numbers = #tpu.dot_dimension_numbers<[1], [0], [0], [1], [0, 0, 1, 1], [], []>} : vector<16x128xf32>, vector<128x256xf32>, vector<16x256xf32> -> vector<16x256xf32>
    %c0_3 = arith.constant 0 : index
    %c0_4 = arith.constant 0 : index
    %3 = vector.load %arg4[%c0_3, %c0_4] : memref<1x256xf32, #tpu.memory_space<vmem>>, vector<1x256xf32>
    %4 = vector.broadcast %3 : vector<1x256xf32> to vector<16x256xf32>
    %5 = arith.addf %2, %4 : vector<16x256xf32>
    %c0_5 = arith.constant 0 : index
    %c0_6 = arith.constant 0 : index
    %6 = vector.load %arg5[%c0_5, %c0_6] : memref<16x256xf32, #tpu.memory_space<vmem>>, vector<16x256xf32>
    tpu.vector_store %arg5[%c0_5, %c0_6], %5 {strides = array<i32>} : memref<16x256xf32, #tpu.memory_space<vmem>>, vector<16x256xf32>,
    return
  }
  func.func @transform_0(%arg0: i32, %arg1: i32) -> (i32, i32) {
    %c0_i32 = arith.constant 0 : i32
    %c0_i32_0 = arith.constant 0 : i32
    return %arg1, %c0_i32 : i32, i32
  }
  func.func @transform_1(%arg0: i32, %arg1: i32) -> (i32, i32) {
    %c0_i32 = arith.constant 0 : i32
    %c0_i32_0 = arith.constant 0 : i32
    return %c0_i32, %arg0 : i32, i32
  }
  func.func @transform_2(%arg0: i32, %arg1: i32) -> (i32, i32) {
    %c0_i32 = arith.constant 0 : i32
    %c0_i32_0 = arith.constant 0 : i32
    return %c0_i32, %arg0 : i32, i32
  }
  func.func @transform_3(%arg0: i32, %arg1: i32) -> (i32, i32) {
    %c0_i32 = arith.constant 0 : i32
    return %arg1, %arg0 : i32, i32
  }
}

</mosaic_0001>

<llo_original>
// kernel: tpu_custom_call.1
$region0: #{tpu_custom_call.1}
  #allocation0 [shape = 'u32[]', space=smem, size = 0x4, offset = 0x4, fixed_abs, tag = 'smem constant byte address 0x4 - core index']
  #allocation1 [shape = 'u32[144,128]{1,0:T(1,128)}', space=vmem, size = 0x12000, scoped, tag = 'internal scratch']
  %s0 = inlined_call_operand.hbm [shape: f32[16,128], index: 0, kind: input, shape index: {}]
  %s1 = inlined_call_operand.hbm [shape: f32[128,256], index: 1, kind: input, shape index: {}]
  %s2 = inlined_call_operand.vmem [shape: f32[1,256], index: 2, kind: input, shape index: {}]
  %s3 = inlined_call_operand.hbm [shape: f32[16,256], index: 3, kind: output, shape index: {}]
  %s4 = sld [smem:[#allocation0]]
  $region30: #{tpu_custom_call.1} parent=0
    _
  %s6 = ssub.s32 1, %s4
  %s7 = scalar_select 0, %s6, %s4
  $region1: #{tpu_custom_call.1} parent=0
    #allocation2 [shape = 'u8[8192]{0}', space=vmem, size = 0x2000, scoped, tag = 'input window, operand 0, single buffered']
    #allocation3 [shape = 's32[1]{0}', space=sflag, size = 0x4, scoped, tag = 'scoped memory for tpu_custom_call.1']
    #allocation4 [shape = 's32[1]{0}', space=sflag, size = 0x4, scoped, tag = 'scoped memory for tpu_custom_call.1']
    #allocation5 [shape = 'u8[131072]{0}', space=vmem, size = 0x20000, scoped, tag = 'input window, operand 1, single buffered']
    #allocation6 [shape = 's32[1]{0}', space=sflag, size = 0x4, scoped, tag = 'scoped memory for tpu_custom_call.1']
    #allocation7 [shape = 'u8[16384]{0}', space=vmem, size = 0x4000, scoped, tag = 'output window, operand 0, single buffered']
    %8 = vsyncpa [#allocation3], 0
    %9 = vsyncpa [#allocation6], 0
    %10 = vsyncpa [#allocation4], 0
    // Predicated region
    $region2: #{tpu_custom_call.1} parent=1 // pred_check
      _
    $region3: #{tpu_custom_call.1} parent=1 // pred_check_branch
      %12 = sbr.rel (0) target = $region5
    $region4: #{tpu_custom_call.1} parent=1 // pred_region
      %s14 = ssub.s32 256, 256
      %15 = vsyncadd [#allocation3], %s14
      %s16 = sshll.u32 [#allocation2], 4
      %s17 = int_to_ptr.vmem [resolvable:$true] %s16
      %22 = dma.hbm_to_vmem [thread:$0]  %s0, 256, %s17, [#allocation3], 128, 128, 8
    $region5: #{tpu_custom_call.1} parent=1 // pred_fallthru
      _
    // Predicated region
    $region6: #{tpu_custom_call.1} parent=1 // pred_check
      _
    $region7: #{tpu_custom_call.1} parent=1 // pred_check_branch
      %24 = sbr.rel (0) target = $region9
    $region8: #{tpu_custom_call.1} parent=1 // pred_region
      %s26 = ssub.s32 4096, 4096
      %27 = vsyncadd [#allocation6], %s26
      %s28 = sshll.u32 [#allocation5], 4
      %s29 = int_to_ptr.vmem [resolvable:$true] %s28
      %34 = dma.hbm_to_vmem [thread:$0]  %s1, 4096, %s29, [#allocation6], 256, 256, 16
    $region9: #{tpu_custom_call.1} parent=1 // pred_fallthru
      _
    // Predicated region
    $region10: #{tpu_custom_call.1} parent=1 // pred_check
      _
    $region11: #{tpu_custom_call.1} parent=1 // pred_check_branch
      %36 = sbr.rel (0) target = $region13
    $region12: #{tpu_custom_call.1} parent=1 // pred_region
      _
    $region13: #{tpu_custom_call.1} parent=1 // pred_fallthru
      _
    // Predicated region
    $region14: #{tpu_custom_call.1} parent=1 // pred_check
      _
    $region15: #{tpu_custom_call.1} parent=1 // pred_check_branch
      %38 = sbr.rel (0) target = $region17
    $region16: #{tpu_custom_call.1} parent=1 // pred_region
      %39 = dma.done [#allocation3], 256
    $region17: #{tpu_custom_call.1} parent=1 // pred_fallthru
      _
    // Predicated region
    $region18: #{tpu_custom_call.1} parent=1 // pred_check
      _
    $region19: #{tpu_custom_call.1} parent=1 // pred_check_branch
      %41 = sbr.rel (0) target = $region21
    $region20: #{tpu_custom_call.1} parent=1 // pred_region
      %42 = dma.done [#allocation6], 4096
    $region21: #{tpu_custom_call.1} parent=1 // pred_fallthru
      _
    %v43 = vld [vmem:[#allocation2] sm:$0xff]
    %v44 = vld [vmem:[#allocation2 + $0x8] sm:$0xff]
    %v45 = vld [vmem:[#allocation5] sm:$0xff]
    %v46 = vld [vmem:[#allocation5 + $0x8] sm:$0xff]
    %v47 = vld [vmem:[#allocation5 + $0x10] sm:$0xff]
    %v48 = vld [vmem:[#allocation5 + $0x18] sm:$0xff]
    %v49 = vld [vmem:[#allocation5 + $0x20] sm:$0xff]
    %v50 = vld [vmem:[#allocation5 + $0x28] sm:$0xff]
    %v51 = vld [vmem:[#allocation5 + $0x30] sm:$0xff]
    %v52 = vld [vmem:[#allocation5 + $0x38] sm:$0xff]
    %v53 = vld [vmem:[#allocation5 + $0x40] sm:$0xff]
    %v54 = vld [vmem:[#allocation5 + $0x48] sm:$0xff]
    %v55 = vld [vmem:[#allocation5 + $0x50] sm:$0xff]
    %v56 = vld [vmem:[#allocation5 + $0x58] sm:$0xff]
    %v57 = vld [vmem:[#allocation5 + $0x60] sm:$0xff]
    %v58 = vld [vmem:[#allocation5 + $0x68] sm:$0xff]
    %v59 = vld [vmem:[#allocation5 + $0x70] sm:$0xff]
    %v60 = vld [vmem:[#allocation5 + $0x78] sm:$0xff]
    %v61 = vld [vmem:[#allocation5 + $0x80] sm:$0xff]
    %v62 = vld [vmem:[#allocation5 + $0x88] sm:$0xff]
    %v63 = vld [vmem:[#allocation5 + $0x90] sm:$0xff]
    %v64 = vld [vmem:[#allocation5 + $0x98] sm:$0xff]
    %v65 = vld [vmem:[#allocation5 + $0xa0] sm:$0xff]
    %v66 = vld [vmem:[#allocation5 + $0xa8] sm:$0xff]
    %v67 = vld [vmem:[#allocation5 + $0xb0] sm:$0xff]
    %v68 = vld [vmem:[#allocation5 + $0xb8] sm:$0xff]
    %v69 = vld [vmem:[#allocation5 + $0xc0] sm:$0xff]
    %v70 = vld [vmem:[#allocation5 + $0xc8] sm:$0xff]
    %v71 = vld [vmem:[#allocation5 + $0xd0] sm:$0xff]
    %v72 = vld [vmem:[#allocation5 + $0xd8] sm:$0xff]
    %v73 = vld [vmem:[#allocation5 + $0xe0] sm:$0xff]
    %v74 = vld [vmem:[#allocation5 + $0xe8] sm:$0xff]
    %v75 = vld [vmem:[#allocation5 + $0xf0] sm:$0xff]
    %v76 = vld [vmem:[#allocation5 + $0xf8] sm:$0xff]
    %v77 = vld [vmem:[%s2] sm:$0x3]
    %v79 = vlaneseq
    %v80 = vshrl.u32 %v79, 7
    %v81 = vsub.s32 0, %v80
    %v82 = vrot.slane %v77, %v81
    %v83 = vlaneseq
    %v84 = vshrl.u32 %v83, 7
    %v85 = vsub.s32 1, %v84
    %v86 = vrot.slane %v77, %v85
    %89 = vmatprep.subr.mxu0 %v46
    %90 = vmatpush1.msra.mxu0 %v45
    %91 = vmatprep.subr.mxu0 %v48
    %92 = vmatpush1.msra.mxu0 %v47
    %93 = vmatprep.subr.mxu0 %v50
    %94 = vmatpush1.msra.mxu0 %v49
    %95 = vmatprep.subr.mxu0 %v52
    %96 = vmatpush1.msra.mxu0 %v51
    %97 = vmatprep.subr.mxu0 %v54
    %98 = vmatpush1.msra.mxu0 %v53
    %99 = vmatprep.subr.mxu0 %v56
    %100 = vmatpush1.msra.mxu0 %v55
    %101 = vmatprep.subr.mxu0 %v58
    %102 = vmatpush1.msra.mxu0 %v57
    %103 = vmatprep.subr.mxu0 %v60
    %104 = vmatpush1.msra.mxu0 %v59
    %105 = vmatprep.subr.mxu0 %v62
    %106 = vmatpush1.msra.mxu0 %v61
    %107 = vmatprep.subr.mxu0 %v64
    %108 = vmatpush1.msra.mxu0 %v63
    %109 = vmatprep.subr.mxu0 %v66
    %110 = vmatpush1.msra.mxu0 %v65
    %111 = vmatprep.subr.mxu0 %v68
    %112 = vmatpush1.msra.mxu0 %v67
    %113 = vmatprep.subr.mxu0 %v70
    %114 = vmatpush1.msra.mxu0 %v69
    %115 = vmatprep.subr.mxu0 %v72
    %116 = vmatpush1.msra.mxu0 %v71
    %117 = vmatprep.subr.mxu0 %v74
    %118 = vmatpush1.msra.mxu0 %v73
    %119 = vmatprep.subr.mxu0 %v76
    %120 = vmatpush1.msra.mxu0 %v75
    %121 = vmatprep.subr.mxu0 0.0
    %122 = vmatpush1.msra.mxu0 0.0
    %123 = vmatprep.subr.mxu0 0.0
    %124 = vmatpush1.msra.mxu0 0.0
    %125 = vmatprep.subr.mxu0 0.0
    %126 = vmatpush1.msra.mxu0 0.0
    %127 = vmatprep.subr.mxu0 0.0
    %128 = vmatpush1.msra.mxu0 0.0
    %129 = vmatprep.subr.mxu0 0.0
    %130 = vmatpush1.msra.mxu0 0.0
    %131 = vmatprep.subr.mxu0 0.0
    %132 = vmatpush1.msra.mxu0 0.0
    %133 = vmatprep.subr.mxu0 0.0
    %134 = vmatpush1.msra.mxu0 0.0
    %135 = vmatprep.subr.mxu0 0.0
    %136 = vmatpush1.msra.mxu0 0.0
    %137 = vmatprep.subr.mxu0 0.0
    %138 = vmatpush1.msra.mxu0 0.0
    %139 = vmatprep.subr.mxu0 0.0
    %140 = vmatpush1.msra.mxu0 0.0
    %141 = vmatprep.subr.mxu0 0.0
    %142 = vmatpush1.msra.mxu0 0.0
    %143 = vmatprep.subr.mxu0 0.0
    %144 = vmatpush1.msra.mxu0 0.0
    %145 = vmatprep.subr.mxu0 0.0
    %146 = vmatpush1.msra.mxu0 0.0
    %147 = vmatprep.subr.mxu0 0.0
    %148 = vmatpush1.msra.mxu0 0.0
    %149 = vmatprep.subr.mxu0 0.0
    %150 = vmatpush1.msra.mxu0 0.0
    %151 = vmatprep.subr.mxu0 0.0
    %152 = vmatpush1.msra.mxu0 0.0
    %153 = vmatprep.mubr.f32.mxu0 0.0
    %154 = vmatmul.mubr.f32.gmra.mrb[0].mxu0 %v43
    %v155 = vpop.f32.mrb[0].mxu0
    %v156 = vadd.f32 %v82, %v155
    %v157 = vpop.f32.mrb[0].mxu0
    %v158 = vadd.f32 %v86, %v157
    %159 = vmatprep.mubr.f32.mxu0 0.0
    %160 = vmatmul.mubr.f32.gmra.mrb[0].mxu0 %v44
    %v161 = vpop.f32.mrb[0].mxu0
    %v162 = vadd.f32 %v82, %v161
    %v163 = vpop.f32.mrb[0].mxu0
    %v164 = vadd.f32 %v86, %v163
    %165 = vdwg.mxu0
    %166 = vst [vmem:[#allocation7] sm:$0xff] %v156
    %167 = vst [vmem:[#allocation7 + $0x8] sm:$0xff] %v158
    %168 = vst [vmem:[#allocation7 + $0x10] sm:$0xff] %v162
    %169 = vst [vmem:[#allocation7 + $0x18] sm:$0xff] %v164
    // Predicated region
    $region22: #{tpu_custom_call.1} parent=1 // pred_check
      _
    $region23: #{tpu_custom_call.1} parent=1 // pred_check_branch
      %171 = sbr.rel (0) target = $region25
    $region24: #{tpu_custom_call.1} parent=1 // pred_region
      %s173 = ssub.s32 512, 512
      %174 = vsyncadd [#allocation4], %s173
      %s175 = sshll.u32 [#allocation7], 4
      %s176 = int_to_ptr.vmem [resolvable:$true] %s175
      %181 = dma.vmem_to_hbm [thread:$0]  %s176, 512, %s3, [#allocation4], 256, 256, 16
    $region25: #{tpu_custom_call.1} parent=1 // pred_fallthru
      _
    // Predicated region
    $region26: #{tpu_custom_call.1} parent=1 // pred_check
      _
    $region27: #{tpu_custom_call.1} parent=1 // pred_check_branch
      %183 = sbr.rel (0) target = $region29
    $region28: #{tpu_custom_call.1} parent=1 // pred_region
      %184 = dma.done [#allocation4], 512
    $region29: #{tpu_custom_call.1} parent=1 // pred_fallthru
      _
    %185 = vsyncpa [#allocation3], 1
    %186 = vsyncpa [#allocation6], 1
    %187 = vsyncpa [#allocation4], 1

// kernel: tpu_custom_call.1
$region0: #{tpu_custom_call.1}
  #allocation0 [shape = 'u32[]', space=smem, size = 0x4, offset = 0x4, fixed_abs, tag = 'smem constant byte address 0x4 - core index']
  #allocation1 [shape = 'u32[144,128]{1,0:T(1,128)}', space=vmem, size = 0x12000, scoped, tag = 'internal scratch']
  %s0 = inlined_call_operand.hbm [shape: f32[16,128], index: 0, kind: input, shape index: {}]
  %s1 = inlined_call_operand.hbm [shape: f32[128,256], index: 1, kind: input, shape index: {}]
  %s2 = inlined_call_operand.vmem [shape: f32[1,256], index: 2, kind: input, shape index: {}]
  %s3 = inlined_call_operand.hbm [shape: f32[16,256], index: 3, kind: output, shape index: {}]
  %s4 = sld [smem:[#allocation0]]
  $region30: #{tpu_custom_call.1} parent=0
    _
  %s6 = ssub.s32 1, %s4
  %s7 = scalar_select 0, %s6, %s4
  $region1: #{tpu_custom_call.1} parent=0
    #allocation2 [shape = 'u8[8192]{0}', space=vmem, size = 0x2000, scoped, tag = 'input window, operand 0, single buffered']
    #allocation3 [shape = 's32[1]{0}', space=sflag, size = 0x4, scoped, tag = 'scoped memory for tpu_custom_call.1']
    #allocation4 [shape = 's32[1]{0}', space=sflag, size = 0x4, scoped, tag = 'scoped memory for tpu_custom_call.1']
    #allocation5 [shape = 'u8[131072]{0}', space=vmem, size = 0x20000, scoped, tag = 'input window, operand 1, single buffered']
    #allocation6 [shape = 's32[1]{0}', space=sflag, size = 0x4, scoped, tag = 'scoped memory for tpu_custom_call.1']
    #allocation7 [shape = 'u8[16384]{0}', space=vmem, size = 0x4000, scoped, tag = 'output window, operand 0, single buffered']
    %8 = vsyncpa [#allocation3], 0
    %9 = vsyncpa [#allocation6], 0
    %10 = vsyncpa [#allocation4], 0
    // Predicated region
    $region2: #{tpu_custom_call.1} parent=1 // pred_check
      _
    $region3: #{tpu_custom_call.1} parent=1 // pred_check_branch
      %12 = sbr.rel (0) target = $region5
    $region4: #{tpu_custom_call.1} parent=1 // pred_region
      %s14 = ssub.s32 256, 256
      %15 = vsyncadd [#allocation3], %s14
      %s16 = sshll.u32 [#allocation2], 4
      %s17 = int_to_ptr.vmem [resolvable:$true] %s16
      %22 = dma.hbm_to_vmem [thread:$0]  %s0, 256, %s17, [#allocation3], 128, 128, 8
    $region5: #{tpu_custom_call.1} parent=1 // pred_fallthru
      _
    // Predicated region
    $region6: #{tpu_custom_call.1} parent=1 // pred_check
      _
    $region7: #{tpu_custom_call.1} parent=1 // pred_check_branch
      %24 = sbr.rel (0) target = $region9
    $region8: #{tpu_custom_call.1} parent=1 // pred_region
      %s26 = ssub.s32 4096, 4096
      %27 = vsyncadd [#allocation6], %s26
      %s28 = sshll.u32 [#allocation5], 4
      %s29 = int_to_ptr.vmem [resolvable:$true] %s28
      %34 = dma.hbm_to_vmem [thread:$0]  %s1, 4096, %s29, [#allocation6], 256, 256, 16
    $region9: #{tpu_custom_call.1} parent=1 // pred_fallthru
      _
    // Predicated region
    $region10: #{tpu_custom_call.1} parent=1 // pred_check
      _
    $region11: #{tpu_custom_call.1} parent=1 // pred_check_branch
      %36 = sbr.rel (0) target = $region13
    $region12: #{tpu_custom_call.1} parent=1 // pred_region
      _
    $region13: #{tpu_custom_call.1} parent=1 // pred_fallthru
      _
    // Predicated region
    $region14: #{tpu_custom_call.1} parent=1 // pred_check
      _
    $region15: #{tpu_custom_call.1} parent=1 // pred_check_branch
      %38 = sbr.rel (0) target = $region17
    $region16: #{tpu_custom_call.1} parent=1 // pred_region
      %39 = dma.done [#allocation3], 256
    $region17: #{tpu_custom_call.1} parent=1 // pred_fallthru
      _
    // Predicated region
    $region18: #{tpu_custom_call.1} parent=1 // pred_check
      _
    $region19: #{tpu_custom_call.1} parent=1 // pred_check_branch
      %41 = sbr.rel (0) target = $region21
    $region20: #{tpu_custom_call.1} parent=1 // pred_region
      %42 = dma.done [#allocation6], 4096
    $region21: #{tpu_custom_call.1} parent=1 // pred_fallthru
      _
    %v43 = vld [vmem:[#allocation2] sm:$0xff]
    %v44 = vld [vmem:[#allocation2 + $0x8] sm:$0xff]
    %v45 = vld [vmem:[#allocation5] sm:$0xff]
    %v46 = vld [vmem:[#allocation5 + $0x8] sm:$0xff]
    %v47 = vld [vmem:[#allocation5 + $0x10] sm:$0xff]
    %v48 = vld [vmem:[#allocation5 + $0x18] sm:$0xff]
    %v49 = vld [vmem:[#allocation5 + $0x20] sm:$0xff]
    %v50 = vld [vmem:[#allocation5 + $0x28] sm:$0xff]
    %v51 = vld [vmem:[#allocation5 + $0x30] sm:$0xff]
    %v52 = vld [vmem:[#allocation5 + $0x38] sm:$0xff]
    %v53 = vld [vmem:[#allocation5 + $0x40] sm:$0xff]
    %v54 = vld [vmem:[#allocation5 + $0x48] sm:$0xff]
    %v55 = vld [vmem:[#allocation5 + $0x50] sm:$0xff]
    %v56 = vld [vmem:[#allocation5 + $0x58] sm:$0xff]
    %v57 = vld [vmem:[#allocation5 + $0x60] sm:$0xff]
    %v58 = vld [vmem:[#allocation5 + $0x68] sm:$0xff]
    %v59 = vld [vmem:[#allocation5 + $0x70] sm:$0xff]
    %v60 = vld [vmem:[#allocation5 + $0x78] sm:$0xff]
    %v61 = vld [vmem:[#allocation5 + $0x80] sm:$0xff]
    %v62 = vld [vmem:[#allocation5 + $0x88] sm:$0xff]
    %v63 = vld [vmem:[#allocation5 + $0x90] sm:$0xff]
    %v64 = vld [vmem:[#allocation5 + $0x98] sm:$0xff]
    %v65 = vld [vmem:[#allocation5 + $0xa0] sm:$0xff]
    %v66 = vld [vmem:[#allocation5 + $0xa8] sm:$0xff]
    %v67 = vld [vmem:[#allocation5 + $0xb0] sm:$0xff]
    %v68 = vld [vmem:[#allocation5 + $0xb8] sm:$0xff]
    %v69 = vld [vmem:[#allocation5 + $0xc0] sm:$0xff]
    %v70 = vld [vmem:[#allocation5 + $0xc8] sm:$0xff]
    %v71 = vld [vmem:[#allocation5 + $0xd0] sm:$0xff]
    %v72 = vld [vmem:[#allocation5 + $0xd8] sm:$0xff]
    %v73 = vld [vmem:[#allocation5 + $0xe0] sm:$0xff]
    %v74 = vld [vmem:[#allocation5 + $0xe8] sm:$0xff]
    %v75 = vld [vmem:[#allocation5 + $0xf0] sm:$0xff]
    %v76 = vld [vmem:[#allocation5 + $0xf8] sm:$0xff]
    %v77 = vld [vmem:[%s2] sm:$0x3]
    %v79 = vlaneseq
    %v80 = vshrl.u32 %v79, 7
    %v81 = vsub.s32 0, %v80
    %v82 = vrot.slane %v77, %v81
    %v83 = vlaneseq
    %v84 = vshrl.u32 %v83, 7
    %v85 = vsub.s32 1, %v84
    %v86 = vrot.slane %v77, %v85
    %89 = vmatprep.subr.mxu0 %v46
    %90 = vmatpush1.msra.mxu0 %v45
    %91 = vmatprep.subr.mxu0 %v48
    %92 = vmatpush1.msra.mxu0 %v47
    %93 = vmatprep.subr.mxu0 %v50
    %94 = vmatpush1.msra.mxu0 %v49
    %95 = vmatprep.subr.mxu0 %v52
    %96 = vmatpush1.msra.mxu0 %v51
    %97 = vmatprep.subr.mxu0 %v54
    %98 = vmatpush1.msra.mxu0 %v53
    %99 = vmatprep.subr.mxu0 %v56
    %100 = vmatpush1.msra.mxu0 %v55
    %101 = vmatprep.subr.mxu0 %v58
    %102 = vmatpush1.msra.mxu0 %v57
    %103 = vmatprep.subr.mxu0 %v60
    %104 = vmatpush1.msra.mxu0 %v59
    %105 = vmatprep.subr.mxu0 %v62
    %106 = vmatpush1.msra.mxu0 %v61
    %107 = vmatprep.subr.mxu0 %v64
    %108 = vmatpush1.msra.mxu0 %v63
    %109 = vmatprep.subr.mxu0 %v66
    %110 = vmatpush1.msra.mxu0 %v65
    %111 = vmatprep.subr.mxu0 %v68
    %112 = vmatpush1.msra.mxu0 %v67
    %113 = vmatprep.subr.mxu0 %v70
    %114 = vmatpush1.msra.mxu0 %v69
    %115 = vmatprep.subr.mxu0 %v72
    %116 = vmatpush1.msra.mxu0 %v71
    %117 = vmatprep.subr.mxu0 %v74
    %118 = vmatpush1.msra.mxu0 %v73
    %119 = vmatprep.subr.mxu0 %v76
    %120 = vmatpush1.msra.mxu0 %v75
    %121 = vmatprep.subr.mxu0 0.0
    %122 = vmatpush1.msra.mxu0 0.0
    %123 = vmatprep.subr.mxu0 0.0
    %124 = vmatpush1.msra.mxu0 0.0
    %125 = vmatprep.subr.mxu0 0.0
    %126 = vmatpush1.msra.mxu0 0.0
    %127 = vmatprep.subr.mxu0 0.0
    %128 = vmatpush1.msra.mxu0 0.0
    %129 = vmatprep.subr.mxu0 0.0
    %130 = vmatpush1.msra.mxu0 0.0
    %131 = vmatprep.subr.mxu0 0.0
    %132 = vmatpush1.msra.mxu0 0.0
    %133 = vmatprep.subr.mxu0 0.0
    %134 = vmatpush1.msra.mxu0 0.0
    %135 = vmatprep.subr.mxu0 0.0
    %136 = vmatpush1.msra.mxu0 0.0
    %137 = vmatprep.subr.mxu0 0.0
    %138 = vmatpush1.msra.mxu0 0.0
    %139 = vmatprep.subr.mxu0 0.0
    %140 = vmatpush1.msra.mxu0 0.0
    %141 = vmatprep.subr.mxu0 0.0
    %142 = vmatpush1.msra.mxu0 0.0
    %143 = vmatprep.subr.mxu0 0.0
    %144 = vmatpush1.msra.mxu0 0.0
    %145 = vmatprep.subr.mxu0 0.0
    %146 = vmatpush1.msra.mxu0 0.0
    %147 = vmatprep.subr.mxu0 0.0
    %148 = vmatpush1.msra.mxu0 0.0
    %149 = vmatprep.subr.mxu0 0.0
    %150 = vmatpush1.msra.mxu0 0.0
    %151 = vmatprep.subr.mxu0 0.0
    %152 = vmatpush1.msra.mxu0 0.0
    %153 = vmatprep.mubr.f32.mxu0 0.0
    %154 = vmatmul.mubr.f32.gmra.mrb[0].mxu0 %v43
    %v155 = vpop.f32.mrb[0].mxu0
    %v156 = vadd.f32 %v82, %v155
    %v157 = vpop.f32.mrb[0].mxu0
    %v158 = vadd.f32 %v86, %v157
    %159 = vmatprep.mubr.f32.mxu0 0.0
    %160 = vmatmul.mubr.f32.gmra.mrb[0].mxu0 %v44
    %v161 = vpop.f32.mrb[0].mxu0
    %v162 = vadd.f32 %v82, %v161
    %v163 = vpop.f32.mrb[0].mxu0
    %v164 = vadd.f32 %v86, %v163
    %165 = vdwg.mxu0
    %166 = vst [vmem:[#allocation7] sm:$0xff] %v156
    %167 = vst [vmem:[#allocation7 + $0x8] sm:$0xff] %v158
    %168 = vst [vmem:[#allocation7 + $0x10] sm:$0xff] %v162
    %169 = vst [vmem:[#allocation7 + $0x18] sm:$0xff] %v164
    // Predicated region
    $region22: #{tpu_custom_call.1} parent=1 // pred_check
      _
    $region23: #{tpu_custom_call.1} parent=1 // pred_check_branch
      %171 = sbr.rel (0) target = $region25
    $region24: #{tpu_custom_call.1} parent=1 // pred_region
      %s173 = ssub.s32 512, 512
      %174 = vsyncadd [#allocation4], %s173
      %s175 = sshll.u32 [#allocation7], 4
      %s176 = int_to_ptr.vmem [resolvable:$true] %s175
      %181 = dma.vmem_to_hbm [thread:$0]  %s176, 512, %s3, [#allocation4], 256, 256, 16
    $region25: #{tpu_custom_call.1} parent=1 // pred_fallthru
      _
    // Predicated region
    $region26: #{tpu_custom_call.1} parent=1 // pred_check
      _
    $region27: #{tpu_custom_call.1} parent=1 // pred_check_branch
      %183 = sbr.rel (0) target = $region29
    $region28: #{tpu_custom_call.1} parent=1 // pred_region
      %184 = dma.done [#allocation4], 512
    $region29: #{tpu_custom_call.1} parent=1 // pred_fallthru
      _
    %185 = vsyncpa [#allocation3], 1
    %186 = vsyncpa [#allocation6], 1
    %187 = vsyncpa [#allocation4], 1

</llo_original>
